<compile_context>
chip_gen: v6e
topology: v6e:2x2x1
jax: 0.10.0
libtpu: 0.0.40
codegen_flags: <defaults>
</compile_context>

<pallas_src>
import jax
import jax.numpy as jnp
from jax.experimental import pallas as pl
from jax.experimental.pallas import tpu as pltpu

_LANES = 128
_OUT_SUBLANES = 8  # f32 sublane tile for the (8, 128) per-core output block


def _round_up(x, m):
    return ((x + m - 1) // m) * m


def _sublane_multiple(dtype):
    # Min second-minor block multiple: 8 for 4-byte, 16 for 2-byte, 32 for 1-byte.
    return max(8, 32 // jnp.dtype(dtype).itemsize)


def _make_focal_kernel(gamma):
    """Kernel closure; `gamma` is a Python constant."""
    g = float(gamma)
    int_gamma = int(g) if (g.is_integer() and 0 < g <= 16) else None

    def kernel(x_ref, t_ref, o_ref):
        i = pl.program_id(1)  # reduction axis (last), "arbitrary"

        # Output block is resident across the reduction axis -> accumulator.
        @pl.when(i == 0)
        def _():
            o_ref[...] = jnp.zeros_like(o_ref)

        x = x_ref[...].astype(jnp.float32)
        t = t_ref[...].astype(jnp.float32)

        # Stable BCE-with-logits, identical value to the PyTorch formula
        #   x - x*t + max(-x,0) + log(exp(-max) + exp(-x-max))
        # but with one fewer EUP op:
        bce = x - x * t + jnp.maximum(-x, 0.0) + jnp.log1p(jnp.exp(-jnp.abs(x)))

        # Focal modulation: weight = sigmoid(y)**gamma, y = -x*(2t-1).
        y = -x * (t * 2.0 - 1.0)
        z = jnp.exp(-jnp.abs(y))  # in (0, 1], never overflows
        if int_gamma is not None:
            # sigmoid(y) = 1/(1+z) if y>=0 else z/(1+z); denom in [1, 2].
            den = 1.0 + z
            r = pl.reciprocal(den, approx=True)   # EUP vrcp
            r = r * (2.0 - den * r)               # one Newton step (VPU) -> ~f32 exact
            s = jnp.where(y >= 0.0, r, z * r)
            w = s
            for _ in range(int_gamma - 1):        # gamma=2 -> one VPU multiply
                w = w * s
        else:
            # General (non-integer) gamma: exp(gamma * logsigmoid(y)).
            w = jnp.exp(g * (jnp.minimum(y, 0.0) - jnp.log1p(z)))

        loss = w * bce

        # Per-step sublane fold into the lane vector of the resident output
        # block; no cross-lane reduce and no SMEM scalar in the hot loop.
        o_ref[0:1, :] += jnp.sum(loss, axis=0, keepdims=True)

    return kernel


def focal_loss(inputs, targets, gamma=2.0, *, tile_rows=None, num_splits=2):
    """Pallas TPU implementation of FocalLoss.forward. Returns a scalar."""
    if targets.shape != inputs.shape:
        raise ValueError(
            'Target size ({}) must be the same as input size ({})'.format(
                targets.shape, inputs.shape))
    inputs = jnp.asarray(inputs)
    targets = jnp.asarray(targets)
    B, C = inputs.shape
    n = B * C

    row_align = max(_sublane_multiple(inputs.dtype),
                    _sublane_multiple(targets.dtype))
    rows_needed = -(-n // _LANES)  # cdiv

    if tile_rows is None:
        # (4096, 128) f32 = 2 MiB per input per step -> ~8 MiB double-buffered
        # for two inputs; amortizes the ~0.35us per-grid-step overhead while
        # fitting every generation's scoped VMEM (incl. v7x).
        tile_rows = 4096
    tile_rows = max(row_align, _round_up(int(tile_rows), row_align))
    tile_rows = min(tile_rows, _round_up(max(rows_needed, 1), row_align))

    num_splits = max(1, int(num_splits))
    total_rows = _round_up(max(rows_needed, 1), num_splits * tile_rows)
    n_padded = total_rows * _LANES

    # Flatten to a lane-dense (rows, 128) slab.  Pad with (x=+200, t=1): the
    # focal loss of that element is exactly 0 (log1p(exp(-200)) == 0 and the
    # focal weight underflows to 0), so padding is loss-neutral and no mask is
    # needed in the kernel.
    x_flat = jnp.ravel(inputs)
    t_flat = jnp.ravel(targets)
    pad = n_padded - n
    if pad:
        x_flat = jnp.concatenate(
            [x_flat, jnp.full((pad,), 200, dtype=x_flat.dtype)])
        t_flat = jnp.concatenate(
            [t_flat, jnp.ones((pad,), dtype=t_flat.dtype)])
    x2 = x_flat.reshape(total_rows, _LANES)
    t2 = t_flat.reshape(total_rows, _LANES)

    rows_per_split = total_rows // num_splits
    nb = rows_per_split // tile_rows

    kernel = _make_focal_kernel(gamma)

    # Size the scoped VMEM limit from the actual double-buffered footprint
    # (2 inputs x 2 buffers); stays well under v7x's 64 MiB physical VMEM.
    bytes_per_step = tile_rows * _LANES * (
        jnp.dtype(x2.dtype).itemsize + jnp.dtype(t2.dtype).itemsize)
    vmem_limit = int(min(64 * 1024 * 1024,
                         max(32 * 1024 * 1024, 4 * bytes_per_step)))

    out = pl.pallas_call(
        kernel,
        out_shape=jax.ShapeDtypeStruct((num_splits * _OUT_SUBLANES, _LANES),
                                       jnp.float32),
        grid_spec=pltpu.PrefetchScalarGridSpec(
            num_scalar_prefetch=0,
            grid=(num_splits, nb),
            in_specs=[
                pl.BlockSpec((tile_rows, _LANES),
                             lambda c, i: (c * nb + i, 0)),
                pl.BlockSpec((tile_rows, _LANES),
                             lambda c, i: (c * nb + i, 0)),
            ],
            # One (8, 128) output block per core; resident across the
            # reduction axis, so it doubles as the VMEM accumulator.
            out_specs=pl.BlockSpec((_OUT_SUBLANES, _LANES),
                                   lambda c, i: (c, 0)),
        ),
        compiler_params=pltpu.CompilerParams(
            dimension_semantics=("parallel", "arbitrary"),
            vmem_limit_bytes=vmem_limit),
    )(x2, t2)

    # mean over batch of per-row (dim=1) sums == total_sum / B
    return jnp.sum(out) / jnp.float32(B)


def _reference(x, t, gamma=2.0):
    """Pure-JAX transcription of the PyTorch FocalLoss.forward."""
    x = jnp.asarray(x).astype(jnp.float32)
    t = jnp.asarray(t).astype(jnp.float32)
    max_val = jnp.maximum(-x, 0.0)
    loss = (x - x * t + max_val
            + jnp.log(jnp.exp(-max_val) + jnp.exp(-x - max_val)))
    invprobs = jax.nn.log_sigmoid(-x * (t * 2.0 - 1.0))
    loss = jnp.exp(invprobs * gamma) * loss
    return jnp.mean(jnp.sum(loss, axis=1))


if __name__ == "__main__":
    key = jax.random.PRNGKey(0)
    kx, kt, kx2, kt2, kx3, kt3 = jax.random.split(key, 6)

    # Shapes consistent with the HPA multi-label head: 28 classes.
    B, C = 8, 28
    logits = jax.random.normal(kx, (B, C), jnp.float32) * 2.0
    targets = (jax.random.uniform(kt, (B, C)) < 0.2).astype(jnp.float32)
    out = jax.block_until_ready(focal_loss(logits, targets, gamma=2.0))
    ref = _reference(logits, targets, gamma=2.0)
    assert out.shape == ()
    assert jnp.allclose(out, ref, atol=1e-4, rtol=1e-4), (out, ref)

    # Odd batch + bf16 inputs: exercises the loss-neutral flat padding and the
    # reduced-HBM-traffic dtype path (upcast to f32 inside the kernel).
    B2 = 12
    logits2 = (jax.random.normal(kx2, (B2, C), jnp.float32) * 2.0
               ).astype(jnp.bfloat16)
    targets2 = (jax.random.uniform(kt2, (B2, C)) < 0.2).astype(jnp.bfloat16)
    out2 = jax.block_until_ready(focal_loss(logits2, targets2, gamma=2.0))
    ref2 = _reference(logits2, targets2, gamma=2.0)
    assert jnp.allclose(out2, ref2, atol=1e-4, rtol=1e-4), (out2, ref2)

    # Non-integer gamma (general exp(gamma*logsigmoid) path) with a small tile
    # so the reduction grid axis takes multiple steps per core.
    B3 = 80
    logits3 = jax.random.normal(kx3, (B3, C), jnp.float32)
    targets3 = (jax.random.uniform(kt3, (B3, C)) < 0.3).astype(jnp.float32)
    out3 = jax.block_until_ready(
        focal_loss(logits3, targets3, gamma=2.5, tile_rows=8))
    ref3 = _reference(logits3, targets3, gamma=2.5)
    assert jnp.allclose(out3, ref3, atol=1e-4, rtol=1e-4), (out3, ref3)

    print("KERNEL_OK")
</pallas_src>

<mosaic_0001>
module attributes {stable_mosaic.version = 11 : i64} {
  func.func @kernel(%arg0: i32, %arg1: i32, %arg2: memref<8x128xf32, #tpu.memory_space<vmem>>, %arg3: memref<8x128xf32, #tpu.memory_space<vmem>>, %arg4: memref<8x128xf32, #tpu.memory_space<vmem>>) attributes {dimension_semantics = [#tpu.dimension_semantics<parallel>, #tpu.dimension_semantics<arbitrary>], iteration_bounds = array<i64: 2, 1>, scalar_prefetch = 0 : i64, scratch_operands = 0 : i64, tpu.core_type = #tpu.core_type<tc>, window_params = [{transform_indices = @transform_0, window_bounds = array<i64: 8, 128>}, {transform_indices = @transform_1, window_bounds = array<i64: 8, 128>}, {transform_indices = @transform_2, window_bounds = array<i64: 8, 128>}]} {
    %c0_i32 = arith.constant 0 : i32
    %0 = arith.cmpi eq, %arg1, %c0_i32 : i32
    %1 = arith.extui %0 : i1 to i32
    %c0_i32_0 = arith.constant 0 : i32
    %2 = arith.cmpi ne, %1, %c0_i32_0 : i32
    scf.if %2 {
      %cst_18 = arith.constant 0.000000e+00 : f32
      %47 = vector.broadcast %cst_18 : f32 to vector<8x128xf32>
      %c0_19 = arith.constant 0 : index
      %c0_20 = arith.constant 0 : index
      %48 = vector.load %arg4[%c0_19, %c0_20] : memref<8x128xf32, #tpu.memory_space<vmem>>, vector<8x128xf32>
      tpu.vector_store %arg4[%c0_19, %c0_20], %47 {strides = array<i32>} : memref<8x128xf32, #tpu.memory_space<vmem>>, vector<8x128xf32>,
    } else {
    }
    %c0 = arith.constant 0 : index
    %c0_1 = arith.constant 0 : index
    %3 = vector.load %arg2[%c0, %c0_1] : memref<8x128xf32, #tpu.memory_space<vmem>>, vector<8x128xf32>
    %c0_2 = arith.constant 0 : index
    %c0_3 = arith.constant 0 : index
    %4 = vector.load %arg3[%c0_2, %c0_3] : memref<8x128xf32, #tpu.memory_space<vmem>>, vector<8x128xf32>
    %5 = arith.mulf %3, %4 : vector<8x128xf32>
    %6 = arith.subf %3, %5 : vector<8x128xf32>
    %cst = arith.constant 0.000000e+00 : f32
    %7 = vector.broadcast %cst : f32 to vector<8x128xf32>
    %8 = arith.subf %7, %3 : vector<8x128xf32>
    %cst_4 = arith.constant 0.000000e+00 : f32
    %9 = vector.broadcast %cst_4 : f32 to vector<8x128xf32>
    %10 = arith.maximumf %8, %9 : vector<8x128xf32>
    %11 = arith.addf %6, %10 : vector<8x128xf32>
    %12 = math.absf %3 : vector<8x128xf32>
    %cst_5 = arith.constant 0.000000e+00 : f32
    %13 = vector.broadcast %cst_5 : f32 to vector<8x128xf32>
    %14 = arith.subf %13, %12 : vector<8x128xf32>
    %15 = math.exp %14 : vector<8x128xf32>
    %16 = math.log1p %15 : vector<8x128xf32>
    %17 = arith.addf %11, %16 : vector<8x128xf32>
    %cst_6 = arith.constant 0.000000e+00 : f32
    %18 = vector.broadcast %cst_6 : f32 to vector<8x128xf32>
    %19 = arith.subf %18, %3 : vector<8x128xf32>
    %cst_7 = arith.constant 2.000000e+00 : f32
    %20 = vector.broadcast %cst_7 : f32 to vector<8x128xf32>
    %21 = arith.mulf %4, %20 : vector<8x128xf32>
    %cst_8 = arith.constant 1.000000e+00 : f32
    %22 = vector.broadcast %cst_8 : f32 to vector<8x128xf32>
    %23 = arith.subf %21, %22 : vector<8x128xf32>
    %24 = arith.mulf %19, %23 : vector<8x128xf32>
    %25 = math.absf %24 : vector<8x128xf32>
    %cst_9 = arith.constant 0.000000e+00 : f32
    %26 = vector.broadcast %cst_9 : f32 to vector<8x128xf32>
    %27 = arith.subf %26, %25 : vector<8x128xf32>
    %28 = math.exp %27 : vector<8x128xf32>
    %cst_10 = arith.constant 1.000000e+00 : f32
    %29 = vector.broadcast %cst_10 : f32 to vector<8x128xf32>
    %30 = arith.addf %29, %28 : vector<8x128xf32>
    %31 = tpu.reciprocal %30 {approx = true} : vector<8x128xf32> -> vector<8x128xf32>
    %32 = arith.mulf %30, %31 : vector<8x128xf32>
    %cst_11 = arith.constant 2.000000e+00 : f32
    %33 = vector.broadcast %cst_11 : f32 to vector<8x128xf32>
    %34 = arith.subf %33, %32 : vector<8x128xf32>
    %35 = arith.mulf %31, %34 : vector<8x128xf32>
    %cst_12 = arith.constant 0.000000e+00 : f32
    %36 = vector.broadcast %cst_12 : f32 to vector<8x128xf32>
    %37 = arith.cmpf oge, %24, %36 : vector<8x128xf32>
    %38 = arith.mulf %28, %35 : vector<8x128xf32>
    %39 = arith.select %37, %35, %38 : vector<8x128xi1>, vector<8x128xf32>
    %40 = arith.mulf %39, %39 : vector<8x128xf32>
    %41 = arith.mulf %40, %17 : vector<8x128xf32>
    %c0_13 = arith.constant 0 : index
    %c0_14 = arith.constant 0 : index
    %42 = vector.load %arg4[%c0_13, %c0_14] : memref<8x128xf32, #tpu.memory_space<vmem>>, vector<1x128xf32>
    %cst_15 = arith.constant dense<0.000000e+00> : vector<128xf32>
    %43 = vector.multi_reduction <add>, %41, %cst_15 [0] : vector<8x128xf32> to vector<128xf32>
    %44 = vector.shape_cast %43 : vector<128xf32> to vector<1x128xf32>
    %45 = arith.addf %42, %44 : vector<1x128xf32>
    %c0_16 = arith.constant 0 : index
    %c0_17 = arith.constant 0 : index
    %46 = vector.load %arg4[%c0_16, %c0_17] : memref<8x128xf32, #tpu.memory_space<vmem>>, vector<1x128xf32>
    tpu.vector_store %arg4[%c0_16, %c0_17], %45 {strides = array<i32>} : memref<8x128xf32, #tpu.memory_space<vmem>>, vector<1x128xf32>,
    return
  }
  func.func @transform_0(%arg0: i32, %arg1: i32) -> (i32, i32) {
    %c1_i32 = arith.constant 1 : i32
    %0 = arith.muli %arg0, %c1_i32 : i32
    %1 = arith.addi %0, %arg1 : i32
    %c0_i32 = arith.constant 0 : i32
    %c0_i32_0 = arith.constant 0 : i32
    return %1, %c0_i32 : i32, i32
  }
  func.func @transform_1(%arg0: i32, %arg1: i32) -> (i32, i32) {
    %c1_i32 = arith.constant 1 : i32
    %0 = arith.muli %arg0, %c1_i32 : i32
    %1 = arith.addi %0, %arg1 : i32
    %c0_i32 = arith.constant 0 : i32
    %c0_i32_0 = arith.constant 0 : i32
    return %1, %c0_i32 : i32, i32
  }
  func.func @transform_2(%arg0: i32, %arg1: i32) -> (i32, i32) {
    %c0_i32 = arith.constant 0 : i32
    %c0_i32_0 = arith.constant 0 : i32
    return %arg0, %c0_i32 : i32, i32
  }
}

</mosaic_0001>

<llo_original>
// kernel: tpu_custom_call.1
$region0: #{tpu_custom_call.1}
  #allocation0 [shape = 'u32[]', space=smem, size = 0x4, offset = 0x4, fixed_abs, tag = 'smem constant byte address 0x4 - core index']
  #allocation1 [shape = 'u32[144,128]{1,0:T(1,128)}', space=vmem, size = 0x12000, scoped, tag = 'internal scratch']
  %s0 = inlined_call_operand.hbm [shape: f32[16,128], index: 0, kind: input, shape index: {}]
  %s1 = inlined_call_operand.hbm [shape: f32[16,128], index: 1, kind: input, shape index: {}]
  %s2 = inlined_call_operand.hbm [shape: f32[16,128], index: 2, kind: output, shape index: {}]
  %s3 = sld [smem:[#allocation0]]
  $region53: #{tpu_custom_call.1} parent=0
    _
  %s5 = ssub.s32 1, %s3
  %s6 = scalar_select 0, %s5, %s3
  $region1: #{tpu_custom_call.1} parent=0
    #allocation2 [shape = 'u8[8192]{0}', space=vmem, size = 0x2000, scoped, tag = 'input window, operand 0']
    #allocation3 [shape = 's32[2]{0}', space=sflag, size = 0x8, scoped, tag = 'scoped memory for tpu_custom_call.1']
    #allocation4 [shape = 's32[2]{0}', space=sflag, size = 0x8, scoped, tag = 'scoped memory for tpu_custom_call.1']
    #allocation5 [shape = 'u8[8192]{0}', space=vmem, size = 0x2000, scoped, tag = 'input window, operand 1']
    #allocation6 [shape = 's32[2]{0}', space=sflag, size = 0x8, scoped, tag = 'scoped memory for tpu_custom_call.1']
    #allocation7 [shape = 'u8[8192]{0}', space=vmem, size = 0x2000, scoped, tag = 'output window, operand 0']
    %7 = vsyncpa [#allocation3], 0
    %s8 = scalar_lea.sflag [#allocation3], 1
    %9 = vsyncpa %s8, 0
    %10 = vsyncpa [#allocation6], 0
    %s11 = scalar_lea.sflag [#allocation6], 1
    %12 = vsyncpa %s11, 0
    %13 = vsyncpa [#allocation4], 0
    %s14 = scalar_lea.sflag [#allocation4], 1
    %15 = vsyncpa %s14, 0
    loop: start=0, step=1, limit=4
    $region2: #{tpu_custom_call.1} parent=1 // loop_pre_header
      _
    $region3: #{tpu_custom_call.1} parent=1 // loop_header
      %s17 = sphi 0, %s21
      %p18 = scmp.ge.s32.totalorder %s17, 4
      %s24 = sphi 0, %s36
      %s25 = sphi 0, %s32
      %s26 = sphi 0, %s24
      %s27 = sphi 0, %s25
      %s28 = sphi 0, %s26
      %s29 = sphi 0, %s27
      %s41 = sphi 0, %s43
      %s44 = sphi 0, %s41
      %s45 = sphi 0, %s44
      %s61 = sphi 0, %s45
      %s69 = sphi 0, %s71
      %s72 = sphi 0, %s69
      %s73 = sphi 0, %s72
      %s89 = sphi 0, %s73
      %s95 = sphi 0, %s97
      %s98 = sphi 0, %s95
      %s99 = sphi 0, %s98
      %s115 = sphi 0, %s99
    $region4: #{tpu_custom_call.1} parent=1 // loop_header_branch
      %20 = sbr.rel (%p18) target = $region8
    $region5: #{tpu_custom_call.1} parent=1 // loop_body
      %s22 = ssub.s32 %s17, 1
      %s23 = ssub.s32 %s17, 2
      %s30 = sadd.s32 1, %s25
      %p31 = scmp.ge.s32.totalorder %s30, 1
      %s32 = scalar_select %p31, 0, %s30
      %s33 = sadd.s32 1, %s24
      %s34 = scalar_select %p31, %s33, %s24
      %p35 = scmp.ge.s32.totalorder %s34, 2
      %s36 = scalar_select %p35, 0, %s34
      %s37 = sadd.s32 %s24, %s25
      %s38 = sadd.s32 %s36, %s32
      %s39 = ssub.s32 %s37, %s38
      %p40 = scmp.eq.s32.totalorder %s39, 0
      %s42 = sadd.s32 %s41, 1
      %s43 = scalar_select %p40, %s41, %s42
      %p46 = pneg %p40
      %p47 = scmp.eq.s32.totalorder %s17, 1
      %p48 = por %p46, %p47
      %p49 = scmp.ne.s32.totalorder %s41, %s44
      %p50 = scmp.eq.s32.totalorder %s17, 0
      %p51 = por %p49, %p50
      %p52 = scmp.ne.s32.totalorder %s41, %s44
      %p53 = scmp.eq.s32.totalorder %s22, 1
      %p54 = por %p52, %p53
      %p55 = scmp.ne.s32.totalorder %s44, %s45
      %p56 = scmp.eq.s32.totalorder %s22, 0
      %p57 = por %p55, %p56
      %p58 = scmp.ne.s32.totalorder %s44, %s45
      %p59 = scmp.eq.s32.totalorder %s23, 1
      %p60 = por %p58, %p59
      %p62 = scmp.ne.s32.totalorder %s45, %s61
      %p63 = scmp.eq.s32.totalorder %s23, 0
      %p64 = por %p62, %p63
      %s65 = sadd.s32 %s24, %s25
      %s66 = sadd.s32 %s36, %s32
      %s67 = ssub.s32 %s65, %s66
      %p68 = scmp.eq.s32.totalorder %s67, 0
      %s70 = sadd.s32 %s69, 1
      %s71 = scalar_select %p68, %s69, %s70
      %p74 = pneg %p68
      %p75 = scmp.eq.s32.totalorder %s17, 1
      %p76 = por %p74, %p75
      %p77 = scmp.ne.s32.totalorder %s69, %s72
      %p78 = scmp.eq.s32.totalorder %s17, 0
      %p79 = por %p77, %p78
      %p80 = scmp.ne.s32.totalorder %s69, %s72
      %p81 = scmp.eq.s32.totalorder %s22, 1
      %p82 = por %p80, %p81
      %p83 = scmp.ne.s32.totalorder %s72, %s73
      %p84 = scmp.eq.s32.totalorder %s22, 0
      %p85 = por %p83, %p84
      %p86 = scmp.ne.s32.totalorder %s72, %s73
      %p87 = scmp.eq.s32.totalorder %s23, 1
      %p88 = por %p86, %p87
      %p90 = scmp.ne.s32.totalorder %s73, %s89
      %p91 = scmp.eq.s32.totalorder %s23, 0
      %p92 = por %p90, %p91
      %s93 = ssub.s32 %s24, %s36
      %p94 = scmp.eq.s32.totalorder %s93, 0
      %s96 = sadd.s32 %s95, 1
      %s97 = scalar_select %p94, %s95, %s96
      %p100 = pneg %p94
      %p101 = scmp.eq.s32.totalorder %s17, 1
      %p102 = por %p100, %p101
      %p103 = scmp.ne.s32.totalorder %s95, %s98
      %p104 = scmp.eq.s32.totalorder %s17, 0
      %p105 = por %p103, %p104
      %p106 = scmp.ne.s32.totalorder %s95, %s98
      %p107 = scmp.eq.s32.totalorder %s22, 1
      %p108 = por %p106, %p107
      %p109 = scmp.ne.s32.totalorder %s98, %s99
      %p110 = scmp.eq.s32.totalorder %s22, 0
      %p111 = por %p109, %p110
      %p112 = scmp.ne.s32.totalorder %s98, %s99
      %p113 = scmp.eq.s32.totalorder %s23, 1
      %p114 = por %p112, %p113
      %p116 = scmp.ne.s32.totalorder %s99, %s115
      %p117 = scmp.eq.s32.totalorder %s23, 0
      %p118 = por %p116, %p117
      %p119 = scmp.le.s32.totalorder 1, %s17
      %p120 = scmp.lt.s32.totalorder %s17, 3
      %p121 = pnand %p119, %p120
      %p122 = pneg %p121
      // Predicated region
      $region9: #{tpu_custom_call.1} parent=5 // pred_check
        _
      $region10: #{tpu_custom_call.1} parent=5 // pred_check_branch
        %124 = sbr.rel (%p121) target = $region12
      $region11: #{tpu_custom_call.1} parent=5 // pred_region
        %s125 = ssub.s32 %s17, 1
      $region12: #{tpu_custom_call.1} parent=5 // pred_fallthru
        _
      %p126 = scmp.lt.s32.totalorder %s17, 2
      // Predicated region
      $region13: #{tpu_custom_call.1} parent=5 // pred_check
        %p127 = pneg %p126
      $region14: #{tpu_custom_call.1} parent=5 // pred_check_branch
        %129 = sbr.rel (%p127) target = $region16
      $region15: #{tpu_custom_call.1} parent=5 // pred_region
        // Predicated region
        $region17: #{tpu_custom_call.1} parent=15 // pred_check
          %p130 = pneg %p51
        $region18: #{tpu_custom_call.1} parent=15 // pred_check_branch
          %132 = sbr.rel (%p130) target = $region20
        $region19: #{tpu_custom_call.1} parent=15 // pred_region
          %s133 = sand.u32 %s41, 1
          %s134 = scalar_lea.sflag [#allocation3], %s133
          %s135 = sand.u32 %s41, 1
          %s136 = smul.addr %s135, 8
          %s137 = scalar_lea.vmem [#allocation2], %s136
          %s138 = sadd.s32 %s24, %s25
          %s140 = ssub.s32 128, 128
          %141 = vsyncadd %s134, %s140
          %s142 = smul.addr %s138, 128
          %s143 = scalar_lea.hbm %s0, %s142
          %s145 = sshll.u32 %s137, 4
          %s146 = int_to_ptr.vmem [resolvable:$true] %s145
          %148 = dma.hbm_to_vmem [thread:$0]  %s143, 128, %s146, %s134
        $region20: #{tpu_custom_call.1} parent=15 // pred_fallthru
          _
        // Predicated region
        $region21: #{tpu_custom_call.1} parent=15 // pred_check
          %p149 = pneg %p79
        $region22: #{tpu_custom_call.1} parent=15 // pred_check_branch
          %151 = sbr.rel (%p149) target = $region24
        $region23: #{tpu_custom_call.1} parent=15 // pred_region
          %s152 = sand.u32 %s69, 1
          %s153 = scalar_lea.sflag [#allocation6], %s152
          %s154 = sand.u32 %s69, 1
          %s155 = smul.addr %s154, 8
          %s156 = scalar_lea.vmem [#allocation5], %s155
          %s157 = sadd.s32 %s24, %s25
          %s159 = ssub.s32 128, 128
          %160 = vsyncadd %s153, %s159
          %s161 = smul.addr %s157, 128
          %s162 = scalar_lea.hbm %s1, %s161
          %s164 = sshll.u32 %s156, 4
          %s165 = int_to_ptr.vmem [resolvable:$true] %s164
          %167 = dma.hbm_to_vmem [thread:$0]  %s162, 128, %s165, %s153
        $region24: #{tpu_custom_call.1} parent=15 // pred_fallthru
          _
      $region16: #{tpu_custom_call.1} parent=5 // pred_fallthru
        _
      %p168 = scmp.le.s32.totalorder 1, %s17
      %p169 = scmp.lt.s32.totalorder %s17, 3
      %p170 = pnand %p168, %p169
      %p171 = pneg %p170
      // Predicated region
      $region25: #{tpu_custom_call.1} parent=5 // pred_check
        _
      $region26: #{tpu_custom_call.1} parent=5 // pred_check_branch
        %173 = sbr.rel (%p170) target = $region28
      $region27: #{tpu_custom_call.1} parent=5 // pred_region
        %s174 = ssub.s32 %s17, 1
        %s175 = sand.u32 %s44, 1
        %s176 = scalar_lea.sflag [#allocation3], %s175
        %s177 = sand.u32 %s44, 1
        %s178 = smul.addr %s177, 8
        %s179 = scalar_lea.vmem [#allocation2], %s178
        // Predicated region
        $region29: #{tpu_custom_call.1} parent=27 // pred_check
          %p180 = pneg %p57
        $region30: #{tpu_custom_call.1} parent=27 // pred_check_branch
          %182 = sbr.rel (%p180) target = $region32
        $region31: #{tpu_custom_call.1} parent=27 // pred_region
          %183 = dma.done %s176, 128
        $region32: #{tpu_custom_call.1} parent=27 // pred_fallthru
          _
        %s184 = sand.u32 %s72, 1
        %s185 = scalar_lea.sflag [#allocation6], %s184
        %s186 = sand.u32 %s72, 1
        %s187 = smul.addr %s186, 8
        %s188 = scalar_lea.vmem [#allocation5], %s187
        // Predicated region
        $region33: #{tpu_custom_call.1} parent=27 // pred_check
          %p189 = pneg %p85
        $region34: #{tpu_custom_call.1} parent=27 // pred_check_branch
          %191 = sbr.rel (%p189) target = $region36
        $region35: #{tpu_custom_call.1} parent=27 // pred_region
          %192 = dma.done %s185, 128
        $region36: #{tpu_custom_call.1} parent=27 // pred_fallthru
          _
        %s193 = sand.u32 %s44, 1
        %s194 = scalar_lea.sflag [#allocation3], %s193
        %s195 = sand.u32 %s44, 1
        %s196 = smul.addr %s195, 8
        %s197 = scalar_lea.vmem [#allocation2], %s196
        %p198 = pneg %p57
        %p199 = pneg %p54
        %s200 = sand.u32 %s72, 1
        %s201 = scalar_lea.sflag [#allocation6], %s200
        %s202 = sand.u32 %s72, 1
        %s203 = smul.addr %s202, 8
        %s204 = scalar_lea.vmem [#allocation5], %s203
        %p205 = pneg %p85
        %p206 = pneg %p82
        %p207 = pneg %p111
        %p208 = pneg %p108
        %s209 = sand.u32 %s98, 1
        %s210 = scalar_lea.sflag [#allocation4], %s209
        %s211 = sand.u32 %s98, 1
        %s212 = smul.addr %s211, 8
        %s213 = scalar_lea.vmem [#allocation7], %s212
        %s214 = sadd.s32 %s26, %s27
        %s215 = sadd.s32 %s26, %s27
        %p216 = scmp.eq.s32.totalorder %s27, 0
        // Predicated region
        $region37: #{tpu_custom_call.1} parent=27 // pred_check
          %p217 = pneg %p216
        $region38: #{tpu_custom_call.1} parent=27 // pred_check_branch
          %219 = sbr.rel (%p217) target = $region40
        $region39: #{tpu_custom_call.1} parent=27 // pred_region
          %220 = vst [vmem:[%s213] sm:$0xff] 0.0
        $region40: #{tpu_custom_call.1} parent=27 // pred_fallthru
          _
        %v221 = vld [vmem:[%s179] sm:$0xff]
        %v222 = vld [vmem:[%s188] sm:$0xff]
        %v223 = vmul.f32 %v221, %v222
        %v224 = vsub.f32 %v221, %v223
        %v225 = vsub.f32 0.0, %v221
        %v226 = vmax.f32 %v225, 0.0
        %v227 = vadd.f32 %v224, %v226
        %v228 = vand.u32 2147483647, %v221
        %v229 = vsub.f32 0.0, %v228
        %v230 = vmul.f32 %v229, 1.442695
        %v231 = vpow.pop %v230
        %v232 = vadd.f32 %v231, 1.0
        %v233 = vlog2.pop %v232
        %v234 = vmul.f32 %v233, 0.6931472
        %v235 = vmul.f32 -0.5, %v231
        %v236 = vadd.f32 %v235, 1.0
        %v237 = vmul.f32 %v236, %v231
        %v238 = vand.u32 2147483647, %v231
        %vm239 = vcmp.lt.f32.partialorder %v238, 0.0004427343
        %v240 = vsel %vm239, %v237, %v234
        %v241 = vadd.f32 %v227, %v240
        %v242 = vmul.f32 %v222, 2.0
        %v243 = vsub.f32 %v242, 1.0
        %v244 = vmul.f32 %v225, %v243
        %v245 = vand.u32 2147483647, %v244
        %v246 = vsub.f32 0.0, %v245
        %v247 = vmul.f32 %v246, 1.442695
        %v248 = vpow.pop %v247
        %v249 = vadd.f32 %v248, 1.0
        %v250 = vrcp.pop %v249
        %v251 = vmul.f32 %v249, %v250
        %v252 = vsub.f32 2.0, %v251
        %v253 = vmul.f32 %v250, %v252
        %vm254 = vcmp.ge.f32.partialorder %v244, 0.0
        %v255 = vmul.f32 %v248, %v253
        %v256 = vsel %vm254, %v253, %v255
        %v257 = vmul.f32 %v256, %v256
        %v258 = vmul.f32 %v257, %v241
        %v259 = vld [vmem:[%s213] sm:$0x1]
        %v260 = vrot.slane %v258, 4
        %v261 = vadd.f32 %v258, %v260
        %v262 = vrot.slane %v261, 2
        %v263 = vadd.f32 %v261, %v262
        %v264 = vrot.slane %v263, 1
        %v265 = vadd.f32 %v263, %v264
        %v266 = vadd.f32 %v259, %v265
        %267 = vst [vmem:[%s213] sm:$0x1] %v266
        %s268 = sand.u32 %s98, 1
        %s269 = scalar_lea.sflag [#allocation4], %s268
        %s270 = sand.u32 %s98, 1
        %s271 = smul.addr %s270, 8
        %s272 = scalar_lea.vmem [#allocation7], %s271
        // Predicated region
        $region41: #{tpu_custom_call.1} parent=27 // pred_check
          %p273 = pneg %p108
        $region42: #{tpu_custom_call.1} parent=27 // pred_check_branch
          %275 = sbr.rel (%p273) target = $region44
        $region43: #{tpu_custom_call.1} parent=27 // pred_region
          %s277 = ssub.s32 128, 128
          %278 = vsyncadd %s269, %s277
          %s279 = smul.addr %s26, 128
          %s280 = scalar_lea.hbm %s2, %s279
          %s282 = sshll.u32 %s272, 4
          %s283 = int_to_ptr.vmem [resolvable:$true] %s282
          %285 = dma.vmem_to_hbm [thread:$0]  %s283, 128, %s280, %s269
        $region44: #{tpu_custom_call.1} parent=27 // pred_fallthru
          _
      $region28: #{tpu_custom_call.1} parent=5 // pred_fallthru
        _
      %p286 = scmp.le.s32.totalorder 2, %s17
      // Predicated region
      $region45: #{tpu_custom_call.1} parent=5 // pred_check
        %p287 = pneg %p286
      $region46: #{tpu_custom_call.1} parent=5 // pred_check_branch
        %289 = sbr.rel (%p287) target = $region48
      $region47: #{tpu_custom_call.1} parent=5 // pred_region
        %s290 = ssub.s32 %s17, 2
        // Predicated region
        $region49: #{tpu_custom_call.1} parent=47 // pred_check
          %p291 = pneg %p114
        $region50: #{tpu_custom_call.1} parent=47 // pred_check_branch
          %293 = sbr.rel (%p291) target = $region52
        $region51: #{tpu_custom_call.1} parent=47 // pred_region
          %s294 = sand.u32 %s99, 1
          %s295 = scalar_lea.sflag [#allocation4], %s294
          %s296 = sand.u32 %s99, 1
          %s297 = smul.addr %s296, 8
          %s298 = scalar_lea.vmem [#allocation7], %s297
          %299 = dma.done %s295, 128
        $region52: #{tpu_custom_call.1} parent=47 // pred_fallthru
          _
      $region48: #{tpu_custom_call.1} parent=5 // pred_fallthru
        _
    $region6: #{tpu_custom_call.1} parent=1 // loop_footer
      %s21 = sadd.s32 1, %s17
    $region7: #{tpu_custom_call.1} parent=1 // loop_footer_branch
      %16 = sbr.rel target = $region3
    $region8: #{tpu_custom_call.1} parent=1 // loop_exit
      _
    %300 = vsyncpa [#allocation3], 1
    %s301 = scalar_lea.sflag [#allocation3], 1
    %302 = vsyncpa %s301, 1
    %303 = vsyncpa [#allocation6], 1
    %s304 = scalar_lea.sflag [#allocation6], 1
    %305 = vsyncpa %s304, 1
    %306 = vsyncpa [#allocation4], 1
    %s307 = scalar_lea.sflag [#allocation4], 1
    %308 = vsyncpa %s307, 1

</llo_original>
